<compile_context>
chip_gen: v7x
topology: tpu7x:2x2x1
jax: 0.10.0
libtpu: 0.0.40
codegen_flags: <defaults>
</compile_context>

<pallas_src>
import functools

import jax
import jax.numpy as jnp
from jax import lax
from jax.experimental import pallas as pl
from jax.experimental.pallas import tpu as pltpu

_LANES = 128


def _mh_rmsnorm_kernel(x_ref, g_ref, o_ref, *, scale, eps):
    """Lane-native path: x_ref/o_ref (1, TH, TS, D), g_ref (TH, 1, D)."""
    xf = x_ref[...].astype(jnp.float32)
    sq = jnp.sum(xf * xf, axis=-1, keepdims=True)             # (1, TH, TS, 1)
    # One EUP rsqrt; clamping ||x||^2 at eps^2 == clamping ||x|| at eps, and
    # the sqrt(D) scale is folded into the cheap per-row inverse.
    inv = lax.rsqrt(jnp.maximum(sq, eps * eps)) * scale
    g = g_ref[...].astype(jnp.float32)[None]                   # (1, TH, 1, D)
    o_ref[...] = (xf * inv * g).astype(o_ref.dtype)


def _mh_rmsnorm_kernel_packed(x_ref, g_ref, m_ref, o_ref, *, scale, eps):
    """Lane-dense path: x_ref/o_ref (1, TH, TS, 128) with 128/D sequence rows
    packed per 128-lane row, g_ref (TH, 1, 128) (gamma tiled along lanes),
    m_ref (128, 128) block-diagonal ones with m[i, j] = 1 iff i//D == j//D."""
    xf = x_ref[...].astype(jnp.float32)
    _, th, ts, lw = xf.shape
    xx = xf * xf
    # Per-D-segment sum of squares broadcast back to every lane of its segment,
    # as one matmul on the otherwise-idle MXU.  HIGHEST precision keeps the
    # f32 operands exact (the weights are exactly 0/1).
    sq2 = jnp.dot(xx.reshape(th * ts, lw), m_ref[...],
                  precision=lax.Precision.HIGHEST,
                  preferred_element_type=jnp.float32)
    sq = sq2.reshape(xf.shape)                                 # (1, TH, TS, 128)
    inv = lax.rsqrt(jnp.maximum(sq, eps * eps)) * scale
    g = g_ref[...].astype(jnp.float32)[None]                   # (1, TH, 1, 128)
    o_ref[...] = (xf * inv * g).astype(o_ref.dtype)


def _chip_budgets():
    """(target_tile_bytes, vmem_limit_bytes) sized per TPU generation."""
    try:
        vmem_cap = int(getattr(pltpu.get_tpu_info(), "vmem_capacity_bytes", 0))
    except Exception:
        vmem_cap = 0
    if vmem_cap >= 128 * 1024 * 1024:        # v5e / v6e: 128 MiB VMEM
        return 4 * 1024 * 1024, 64 * 1024 * 1024
    # v7x (64 MiB per TensorCore) or unknown: stay conservative.
    return 2 * 1024 * 1024, 40 * 1024 * 1024


def _pick_tiles(H, B, rows, bytes_per_row, sublane, target_tile_bytes,
                min_steps=8):
    """Pick (TH heads/block, TS rows/block) for grid (cdiv(H,TH), B, cdiv(rows,TS))."""
    rows_cap = max(sublane, target_tile_bytes // bytes_per_row)
    if rows <= rows_cap:
        TS = rows
        # Only pack several heads per block when TS keeps sublane alignment
        # (keeps the in-kernel (TH*TS, lanes) view a free relayout).
        if rows % sublane == 0:
            TH = max(1, min(H, target_tile_bytes // max(1, rows * bytes_per_row)))
        else:
            TH = 1
    else:
        TS = max(sublane, (rows_cap // sublane) * sublane)
        TH = 1

    def n_steps(th, ts):
        return pl.cdiv(H, th) * B * pl.cdiv(rows, ts)

    # v7x has two TensorCores: keep enough parallel grid steps to feed both
    # (and to give the BlockSpec pipeline fill/drain something to overlap with).
    while TH > 1 and n_steps(TH, TS) < min_steps:
        TH = max(1, TH // 2)
    while n_steps(TH, TS) < min_steps and TS > sublane:
        new_ts = ((TS // 2) // sublane) * sublane
        if new_ts < sublane:
            break
        TS = new_ts
    return int(TH), int(TS)


def multi_head_rms_norm(x, gamma, *, eps=1e-12):
    """x: (B, H, S, D), gamma: (H, 1, D) -> F.normalize(x, dim=-1)*gamma*sqrt(D)."""
    B, H, S, D = x.shape
    assert gamma.shape == (H, 1, D), (gamma.shape, (H, 1, D))
    scale = float(D) ** 0.5
    eps = float(eps)

    itemsize = jnp.dtype(x.dtype).itemsize
    sublane = 16 if x.dtype == jnp.bfloat16 else 8
    target_tile_bytes, vmem_limit = _chip_budgets()

    packed = (D < _LANES) and (_LANES % D == 0) and (S % (_LANES // D) == 0)
    if packed:
        # Lane-dense layout: pack 128/D consecutive sequence rows per lane row.
        reps = _LANES // D
        rows, lanes = S // reps, _LANES
        x_in = x.reshape(B, H, rows, lanes)
        g_in = jnp.tile(gamma, (1, 1, reps))                    # (H, 1, 128)
        lane = jnp.arange(_LANES, dtype=jnp.int32)
        seg_mat = (lane[:, None] // D == lane[None, :] // D).astype(jnp.float32)
    else:
        # TODO(synk): D that doesn't pack evenly into 128 lanes (128 % D != 0
        # or S % (128//D) != 0) keeps the lane-sparse layout; an LCM-based
        # packing could still make those cases lane-dense.
        rows, lanes = S, D
        x_in, g_in, seg_mat = x, gamma, None

    TH, TS = _pick_tiles(H, B, rows, lanes * itemsize, sublane, target_tile_bytes)
    grid = (pl.cdiv(H, TH), B, pl.cdiv(rows, TS))

    x_spec = pl.BlockSpec((1, TH, TS, lanes), lambda h, b, s: (b, h, s, 0))
    # gamma (and the ones matrix) depend only on the outermost grid axis, so
    # they stay VMEM-resident across all inner (batch, row-tile) iterations.
    g_spec = pl.BlockSpec((TH, 1, lanes), lambda h, b, s: (h, 0, 0))
    out_spec = pl.BlockSpec((1, TH, TS, lanes), lambda h, b, s: (b, h, s, 0))

    if packed:
        kernel = functools.partial(_mh_rmsnorm_kernel_packed, scale=scale, eps=eps)
        in_specs = [x_spec, g_spec,
                    pl.BlockSpec((_LANES, _LANES), lambda h, b, s: (0, 0))]
        args = (x_in, g_in, seg_mat)
    else:
        kernel = functools.partial(_mh_rmsnorm_kernel, scale=scale, eps=eps)
        in_specs = [x_spec, g_spec]
        args = (x_in, g_in)

    out = pl.pallas_call(
        kernel,
        out_shape=jax.ShapeDtypeStruct((B, H, rows, lanes), x.dtype),
        grid_spec=pltpu.PrefetchScalarGridSpec(
            num_scalar_prefetch=0,
            grid=grid,
            in_specs=in_specs,
            out_specs=out_spec,
        ),
        compiler_params=pltpu.CompilerParams(
            dimension_semantics=("parallel", "parallel", "parallel"),
            vmem_limit_bytes=vmem_limit,
        ),
    )(*args)

    return out.reshape(B, H, S, D) if packed else out


def multi_head_rms_norm_ref(x, gamma, *, eps=1e-12):
    """Pure-JAX reference mirroring the PyTorch forward."""
    D = x.shape[-1]
    xf = x.astype(jnp.float32)
    norm = jnp.sqrt(jnp.sum(xf * xf, axis=-1, keepdims=True))
    normalized = xf / jnp.maximum(norm, eps)
    gf = gamma.astype(jnp.float32)[None]     # (1, H, 1, D)
    return (normalized * gf * (float(D) ** 0.5)).astype(x.dtype)


if __name__ == "__main__":
    key = jax.random.PRNGKey(0)

    # Case 1 (module-sized): lane-dense packed path, D=32 -> 4 rows per lane row.
    B, H, S, D = 2, 4, 8, 32
    kx, kg, key = jax.random.split(key, 3)
    x = jax.random.normal(kx, (B, H, S, D), dtype=jnp.float32)
    # Module init is torch.ones(heads, 1, dim); perturb deterministically so
    # the per-head gamma broadcast is actually exercised.
    gamma = 1.0 + 0.1 * jax.random.normal(kg, (H, 1, D), dtype=jnp.float32)
    out = jax.block_until_ready(multi_head_rms_norm(x, gamma))
    ref = multi_head_rms_norm_ref(x, gamma)
    assert out.shape == (B, H, S, D)
    assert jnp.allclose(out, ref, atol=1e-5, rtol=1e-5), float(
        jnp.max(jnp.abs(out - ref)))

    # Case 2: lane-native fallback path + ragged cdiv tiling (D=48, S=20).
    B2, H2, S2, D2 = 2, 2, 20, 48
    kx2, kg2, key = jax.random.split(key, 3)
    x2 = jax.random.normal(kx2, (B2, H2, S2, D2), dtype=jnp.float32)
    gamma2 = 1.0 + 0.1 * jax.random.normal(kg2, (H2, 1, D2), dtype=jnp.float32)
    out2 = jax.block_until_ready(multi_head_rms_norm(x2, gamma2))
    ref2 = multi_head_rms_norm_ref(x2, gamma2)
    assert out2.shape == (B2, H2, S2, D2)
    assert jnp.allclose(out2, ref2, atol=1e-5, rtol=1e-5), float(
        jnp.max(jnp.abs(out2 - ref2)))

    print("KERNEL_OK")
</pallas_src>

<mosaic_0001>
module attributes {stable_mosaic.version = 11 : i64} {
  func.func @_mh_rmsnorm_kernel_packed(%arg0: i32, %arg1: i32, %arg2: i32, %arg3: memref<1x1x2x128xf32, #tpu.memory_space<vmem>>, %arg4: memref<1x1x128xf32, #tpu.memory_space<vmem>>, %arg5: memref<128x128xf32, #tpu.memory_space<vmem>>, %arg6: memref<1x1x2x128xf32, #tpu.memory_space<vmem>>) attributes {dimension_semantics = [#tpu.dimension_semantics<parallel>, #tpu.dimension_semantics<parallel>, #tpu.dimension_semantics<parallel>], iteration_bounds = array<i64: 4, 2, 1>, scalar_prefetch = 0 : i64, scratch_operands = 0 : i64, tpu.core_type = #tpu.core_type<tc>, window_params = [{transform_indices = @transform_0, window_bounds = array<i64: 1, 1, 2, 128>}, {transform_indices = @transform_1, window_bounds = array<i64: 1, 1, 128>}, {pipeline_mode = #tpu.pipeline_mode<synchronous>, transform_indices = @transform_2, window_bounds = array<i64: 128, 128>}, {transform_indices = @transform_3, window_bounds = array<i64: 1, 1, 2, 128>}]} {
    %c0 = arith.constant 0 : index
    %c0_0 = arith.constant 0 : index
    %c0_1 = arith.constant 0 : index
    %c0_2 = arith.constant 0 : index
    %0 = vector.load %arg3[%c0, %c0_0, %c0_1, %c0_2] : memref<1x1x2x128xf32, #tpu.memory_space<vmem>>, vector<1x1x2x128xf32>
    %1 = arith.mulf %0, %0 : vector<1x1x2x128xf32>
    %2 = vector.shape_cast %1 : vector<1x1x2x128xf32> to vector<2x128xf32>
    %c0_3 = arith.constant 0 : index
    %c0_4 = arith.constant 0 : index
    %3 = vector.load %arg5[%c0_3, %c0_4] : memref<128x128xf32, #tpu.memory_space<vmem>>, vector<128x128xf32>
    %cst = arith.constant dense<0.000000e+00> : vector<2x128xf32>
    %4 = tpu.matmul %2, %3, %cst {dimension_numbers = #tpu.dot_dimension_numbers<[1], [0], [0], [1], [0, 0, 1, 1], [], []>, precision = #tpu.contract_precision<fp32>} : vector<2x128xf32>, vector<128x128xf32>, vector<2x128xf32> -> vector<2x128xf32>
    %5 = vector.shape_cast %4 : vector<2x128xf32> to vector<1x1x2x128xf32>
    %cst_5 = arith.constant 1.000000e-24 : f32
    %6 = vector.broadcast %cst_5 : f32 to vector<1x1x2x128xf32>
    %7 = arith.maximumf %5, %6 : vector<1x1x2x128xf32>
    %8 = math.rsqrt %7 : vector<1x1x2x128xf32>
    %cst_6 = arith.constant 5.65685415 : f32
    %9 = vector.broadcast %cst_6 : f32 to vector<1x1x2x128xf32>
    %10 = arith.mulf %8, %9 : vector<1x1x2x128xf32>
    %c0_7 = arith.constant 0 : index
    %c0_8 = arith.constant 0 : index
    %c0_9 = arith.constant 0 : index
    %11 = vector.load %arg4[%c0_7, %c0_8, %c0_9] : memref<1x1x128xf32, #tpu.memory_space<vmem>>, vector<1x1x128xf32>
    %12 = vector.shape_cast %11 : vector<1x1x128xf32> to vector<1x1x1x128xf32>
    %13 = arith.mulf %0, %10 : vector<1x1x2x128xf32>
    %14 = vector.broadcast %12 : vector<1x1x1x128xf32> to vector<1x1x2x128xf32>
    %15 = arith.mulf %13, %14 : vector<1x1x2x128xf32>
    %c0_10 = arith.constant 0 : index
    %c0_11 = arith.constant 0 : index
    %c0_12 = arith.constant 0 : index
    %c0_13 = arith.constant 0 : index
    %16 = vector.load %arg6[%c0_10, %c0_11, %c0_12, %c0_13] : memref<1x1x2x128xf32, #tpu.memory_space<vmem>>, vector<1x1x2x128xf32>
    tpu.vector_store %arg6[%c0_10, %c0_11, %c0_12, %c0_13], %15 {strides = array<i32>} : memref<1x1x2x128xf32, #tpu.memory_space<vmem>>, vector<1x1x2x128xf32>,
    return
  }
  func.func @transform_0(%arg0: i32, %arg1: i32, %arg2: i32) -> (i32, i32, i32, i32) {
    %c0_i32 = arith.constant 0 : i32
    %c0_i32_0 = arith.constant 0 : i32
    return %arg1, %arg0, %arg2, %c0_i32 : i32, i32, i32, i32
  }
  func.func @transform_1(%arg0: i32, %arg1: i32, %arg2: i32) -> (i32, i32, i32) {
    %c0_i32 = arith.constant 0 : i32
    %c0_i32_0 = arith.constant 0 : i32
    %c0_i32_1 = arith.constant 0 : i32
    return %arg0, %c0_i32, %c0_i32_0 : i32, i32, i32
  }
  func.func @transform_2(%arg0: i32, %arg1: i32, %arg2: i32) -> (i32, i32) {
    %c0_i32 = arith.constant 0 : i32
    %c0_i32_0 = arith.constant 0 : i32
    %c0_i32_1 = arith.constant 0 : i32
    return %c0_i32, %c0_i32_0 : i32, i32
  }
  func.func @transform_3(%arg0: i32, %arg1: i32, %arg2: i32) -> (i32, i32, i32, i32) {
    %c0_i32 = arith.constant 0 : i32
    %c0_i32_0 = arith.constant 0 : i32
    return %arg1, %arg0, %arg2, %c0_i32 : i32, i32, i32, i32
  }
}

</mosaic_0001>

<llo_original>
// kernel: tpu_custom_call.1
$region0: #{tpu_custom_call.1}
  #allocation0 [shape = 'u32[]', space=smem, size = 0x4, offset = 0x4, fixed_abs, tag = 'smem constant byte address 0x4 - core index']
  #allocation1 [shape = 'u32[144,128]{1,0:T(1,128)}', space=vmem, size = 0x12000, scoped, tag = 'internal scratch']
  %s0 = inlined_call_operand.hbm [shape: f32[2,4,2,128], index: 0, kind: input, shape index: {}]
  %s1 = inlined_call_operand.hbm [shape: f32[4,1,128], index: 1, kind: input, shape index: {}]
  %s2 = inlined_call_operand.hbm [shape: f32[128,128], index: 2, kind: input, shape index: {}]
  %s3 = inlined_call_operand.hbm [shape: f32[2,4,2,128], index: 3, kind: output, shape index: {}]
  %s4 = sld [smem:[#allocation0]]
  $region57: #{tpu_custom_call.1} parent=0
    _
  %s6 = ssub.s32 1, %s4
  %s7 = scalar_select 0, %s6, %s4
  $region1: #{tpu_custom_call.1} parent=0
    #allocation2 [shape = 'u8[2048]{0}', space=vmem, size = 0x800, scoped, tag = 'input window, operand 0']
    #allocation3 [shape = 's32[2]{0}', space=sflag, size = 0x8, scoped, tag = 'scoped memory for tpu_custom_call.1']
    #allocation4 [shape = 's32[2]{0}', space=sflag, size = 0x8, scoped, tag = 'scoped memory for tpu_custom_call.1']
    #allocation5 [shape = 'u8[1024]{0}', space=vmem, size = 0x400, scoped, tag = 'input window, operand 1']
    #allocation6 [shape = 's32[2]{0}', space=sflag, size = 0x8, scoped, tag = 'scoped memory for tpu_custom_call.1']
    #allocation7 [shape = 'u8[65536]{0}', space=vmem, size = 0x10000, scoped, tag = 'input window, operand 2, single buffered']
    #allocation8 [shape = 'u8[2048]{0}', space=vmem, size = 0x800, scoped, tag = 'output window, operand 0']
    %8 = vsyncpa [#allocation3], 0
    %s9 = scalar_lea.sflag [#allocation3], 1
    %10 = vsyncpa %s9, 0
    %11 = vsyncpa [#allocation6], 0
    %s12 = scalar_lea.sflag [#allocation6], 1
    %13 = vsyncpa %s12, 0
    %14 = vsyncpa [#allocation4], 0
    %s15 = scalar_lea.sflag [#allocation4], 1
    %16 = vsyncpa %s15, 0
    loop: start=0, step=1, limit=10
    $region2: #{tpu_custom_call.1} parent=1 // loop_pre_header
      _
    $region3: #{tpu_custom_call.1} parent=1 // loop_header
      %s18 = sphi 0, %s22
      %p19 = scmp.ge.s32.totalorder %s18, 10
      %s25 = sphi 0, %s44
      %s26 = sphi 0, %s40
      %s27 = sphi 0, %s36
      %s28 = sphi 0, %s25
      %s29 = sphi 0, %s26
      %s30 = sphi 0, %s27
      %s31 = sphi 0, %s28
      %s32 = sphi 0, %s29
      %s33 = sphi 0, %s30
      %s51 = sphi 0, %s53
      %s54 = sphi 0, %s51
      %s55 = sphi 0, %s54
      %s71 = sphi 0, %s55
      %s77 = sphi 0, %s79
      %s80 = sphi 0, %s77
      %s81 = sphi 0, %s80
      %s97 = sphi 0, %s81
      %s101 = sphi 0, %s101
      %s103 = sphi 0, %s101
      %s104 = sphi 0, %s103
      %s118 = sphi 0, %s104
      %s128 = sphi 0, %s130
      %s131 = sphi 0, %s128
      %s132 = sphi 0, %s131
      %s148 = sphi 0, %s132
    $region4: #{tpu_custom_call.1} parent=1 // loop_header_branch
      %21 = sbr.rel (%p19) target = $region8
    $region5: #{tpu_custom_call.1} parent=1 // loop_body
      %s23 = ssub.s32 %s18, 1
      %s24 = ssub.s32 %s18, 2
      %s34 = sadd.s32 1, %s27
      %p35 = scmp.ge.s32.totalorder %s34, 1
      %s36 = scalar_select %p35, 0, %s34
      %s37 = sadd.s32 1, %s26
      %s38 = scalar_select %p35, %s37, %s26
      %p39 = scmp.ge.s32.totalorder %s38, 2
      %s40 = scalar_select %p39, 0, %s38
      %s41 = sadd.s32 1, %s25
      %s42 = scalar_select %p39, %s41, %s25
      %p43 = scmp.ge.s32.totalorder %s42, 4
      %s44 = scalar_select %p43, 0, %s42
      %s45 = ssub.s32 %s26, %s40
      %s46 = ssub.s32 %s25, %s44
      %s47 = sor.u32 %s45, %s46
      %s48 = ssub.s32 %s27, %s36
      %s49 = sor.u32 %s47, %s48
      %p50 = scmp.eq.s32.totalorder %s49, 0
      %s52 = sadd.s32 %s51, 1
      %s53 = scalar_select %p50, %s51, %s52
      %p56 = pneg %p50
      %p57 = scmp.eq.s32.totalorder %s18, 7
      %p58 = por %p56, %p57
      %p59 = scmp.ne.s32.totalorder %s51, %s54
      %p60 = scmp.eq.s32.totalorder %s18, 0
      %p61 = por %p59, %p60
      %p62 = scmp.ne.s32.totalorder %s51, %s54
      %p63 = scmp.eq.s32.totalorder %s23, 7
      %p64 = por %p62, %p63
      %p65 = scmp.ne.s32.totalorder %s54, %s55
      %p66 = scmp.eq.s32.totalorder %s23, 0
      %p67 = por %p65, %p66
      %p68 = scmp.ne.s32.totalorder %s54, %s55
      %p69 = scmp.eq.s32.totalorder %s24, 7
      %p70 = por %p68, %p69
      %p72 = scmp.ne.s32.totalorder %s55, %s71
      %p73 = scmp.eq.s32.totalorder %s24, 0
      %p74 = por %p72, %p73
      %s75 = ssub.s32 %s25, %s44
      %p76 = scmp.eq.s32.totalorder %s75, 0
      %s78 = sadd.s32 %s77, 1
      %s79 = scalar_select %p76, %s77, %s78
      %p82 = pneg %p76
      %p83 = scmp.eq.s32.totalorder %s18, 7
      %p84 = por %p82, %p83
      %p85 = scmp.ne.s32.totalorder %s77, %s80
      %p86 = scmp.eq.s32.totalorder %s18, 0
      %p87 = por %p85, %p86
      %p88 = scmp.ne.s32.totalorder %s77, %s80
      %p89 = scmp.eq.s32.totalorder %s23, 7
      %p90 = por %p88, %p89
      %p91 = scmp.ne.s32.totalorder %s80, %s81
      %p92 = scmp.eq.s32.totalorder %s23, 0
      %p93 = por %p91, %p92
      %p94 = scmp.ne.s32.totalorder %s80, %s81
      %p95 = scmp.eq.s32.totalorder %s24, 7
      %p96 = por %p94, %p95
      %p98 = scmp.ne.s32.totalorder %s81, %s97
      %p99 = scmp.eq.s32.totalorder %s24, 0
      %p100 = por %p98, %p99
      %s102 = sadd.s32 %s101, 1
      %p105 = scmp.eq.s32.totalorder %s18, 7
      %p106 = scmp.ne.s32.totalorder %s101, %s103
      %p107 = scmp.eq.s32.totalorder %s18, 0
      %p108 = por %p106, %p107
      %p109 = scmp.ne.s32.totalorder %s101, %s103
      %p110 = scmp.eq.s32.totalorder %s23, 7
      %p111 = por %p109, %p110
      %p112 = scmp.ne.s32.totalorder %s103, %s104
      %p113 = scmp.eq.s32.totalorder %s23, 0
      %p114 = por %p112, %p113
      %p115 = scmp.ne.s32.totalorder %s103, %s104
      %p116 = scmp.eq.s32.totalorder %s24, 7
      %p117 = por %p115, %p116
      %p119 = scmp.ne.s32.totalorder %s104, %s118
      %p120 = scmp.eq.s32.totalorder %s24, 0
      %p121 = por %p119, %p120
      %s122 = ssub.s32 %s26, %s40
      %s123 = ssub.s32 %s25, %s44
      %s124 = sor.u32 %s122, %s123
      %s125 = ssub.s32 %s27, %s36
      %s126 = sor.u32 %s124, %s125
      %p127 = scmp.eq.s32.totalorder %s126, 0
      %s129 = sadd.s32 %s128, 1
      %s130 = scalar_select %p127, %s128, %s129
      %p133 = pneg %p127
      %p134 = scmp.eq.s32.totalorder %s18, 7
      %p135 = por %p133, %p134
      %p136 = scmp.ne.s32.totalorder %s128, %s131
      %p137 = scmp.eq.s32.totalorder %s18, 0
      %p138 = por %p136, %p137
      %p139 = scmp.ne.s32.totalorder %s128, %s131
      %p140 = scmp.eq.s32.totalorder %s23, 7
      %p141 = por %p139, %p140
      %p142 = scmp.ne.s32.totalorder %s131, %s132
      %p143 = scmp.eq.s32.totalorder %s23, 0
      %p144 = por %p142, %p143
      %p145 = scmp.ne.s32.totalorder %s131, %s132
      %p146 = scmp.eq.s32.totalorder %s24, 7
      %p147 = por %p145, %p146
      %p149 = scmp.ne.s32.totalorder %s132, %s148
      %p150 = scmp.eq.s32.totalorder %s24, 0
      %p151 = por %p149, %p150
      %p152 = scmp.le.s32.totalorder 1, %s18
      %p153 = scmp.lt.s32.totalorder %s18, 9
      %p154 = pnand %p152, %p153
      %p155 = pneg %p154
      // Predicated region
      $region9: #{tpu_custom_call.1} parent=5 // pred_check
        _
      $region10: #{tpu_custom_call.1} parent=5 // pred_check_branch
        %157 = sbr.rel (%p154) target = $region12
      $region11: #{tpu_custom_call.1} parent=5 // pred_region
        %s158 = ssub.s32 %s18, 1
        // Predicated region
        $region13: #{tpu_custom_call.1} parent=11 // pred_check
          %p159 = pneg %p114
        $region14: #{tpu_custom_call.1} parent=11 // pred_check_branch
          %161 = sbr.rel (%p159) target = $region16
        $region15: #{tpu_custom_call.1} parent=11 // pred_region
          %s163 = ssub.s32 2048, 2048
          %164 = vsyncadd [#allocation6], %s163
          %s165 = sshll.u32 [#allocation7], 4
          %s166 = int_to_ptr.vmem [resolvable:$true] %s165
          %171 = dma.hbm_to_vmem [thread:$0]  %s2, 2048, %s166, [#allocation6], 128, 128, 8
        $region16: #{tpu_custom_call.1} parent=11 // pred_fallthru
          _
      $region12: #{tpu_custom_call.1} parent=5 // pred_fallthru
        _
      %p172 = scmp.lt.s32.totalorder %s18, 8
      // Predicated region
      $region17: #{tpu_custom_call.1} parent=5 // pred_check
        %p173 = pneg %p172
      $region18: #{tpu_custom_call.1} parent=5 // pred_check_branch
        %175 = sbr.rel (%p173) target = $region20
      $region19: #{tpu_custom_call.1} parent=5 // pred_region
        // Predicated region
        $region21: #{tpu_custom_call.1} parent=19 // pred_check
          %p176 = pneg %p61
        $region22: #{tpu_custom_call.1} parent=19 // pred_check_branch
          %178 = sbr.rel (%p176) target = $region24
        $region23: #{tpu_custom_call.1} parent=19 // pred_region
          %s179 = sand.u32 %s51, 1
          %s180 = scalar_lea.sflag [#allocation3], %s179
          %s181 = sand.u32 %s51, 1
          %s182 = smul.addr %s181, 2
          %s183 = scalar_lea.vmem [#allocation2], %s182
          %s185 = ssub.s32 32, 32
          %186 = vsyncadd %s180, %s185
          %s187 = sadd.s32 %s27, %s25
          %s188 = smul.addr %s26, 4
          %s189 = sadd.s32 %s187, %s188
          %s190 = smul.addr %s189, 32
          %s191 = scalar_lea.hbm %s0, %s190
          %s193 = sshll.u32 %s183, 4
          %s194 = int_to_ptr.vmem [resolvable:$true] %s193
          %196 = dma.hbm_to_vmem [thread:$0]  %s191, 32, %s194, %s180
        $region24: #{tpu_custom_call.1} parent=19 // pred_fallthru
          _
        // Predicated region
        $region25: #{tpu_custom_call.1} parent=19 // pred_check
          %p197 = pneg %p87
        $region26: #{tpu_custom_call.1} parent=19 // pred_check_branch
          %199 = sbr.rel (%p197) target = $region28
        $region27: #{tpu_custom_call.1} parent=19 // pred_region
          %s200 = sand.u32 %s18, 1
          %s201 = scalar_lea.sflag [#allocation6], %s200
          %s202 = sand.u32 %s77, 1
          %s203 = scalar_lea.vmem [#allocation5], %s202
          %s205 = ssub.s32 16, 16
          %206 = vsyncadd %s201, %s205
          %s207 = smul.addr %s25, 16
          %s208 = scalar_lea.hbm %s1, %s207
          %s210 = sshll.u32 %s203, 4
          %s211 = int_to_ptr.vmem [resolvable:$true] %s210
          %213 = dma.hbm_to_vmem [thread:$0]  %s208, 16, %s211, %s201
        $region28: #{tpu_custom_call.1} parent=19 // pred_fallthru
          _
      $region20: #{tpu_custom_call.1} parent=5 // pred_fallthru
        _
      %p214 = scmp.le.s32.totalorder 1, %s18
      %p215 = scmp.lt.s32.totalorder %s18, 9
      %p216 = pnand %p214, %p215
      %p217 = pneg %p216
      // Predicated region
      $region29: #{tpu_custom_call.1} parent=5 // pred_check
        _
      $region30: #{tpu_custom_call.1} parent=5 // pred_check_branch
        %219 = sbr.rel (%p216) target = $region32
      $region31: #{tpu_custom_call.1} parent=5 // pred_region
        %s220 = ssub.s32 %s18, 1
        %s221 = sand.u32 %s54, 1
        %s222 = scalar_lea.sflag [#allocation3], %s221
        %s223 = sand.u32 %s54, 1
        %s224 = smul.addr %s223, 2
        %s225 = scalar_lea.vmem [#allocation2], %s224
        // Predicated region
        $region33: #{tpu_custom_call.1} parent=31 // pred_check
          %p226 = pneg %p67
        $region34: #{tpu_custom_call.1} parent=31 // pred_check_branch
          %228 = sbr.rel (%p226) target = $region36
        $region35: #{tpu_custom_call.1} parent=31 // pred_region
          %229 = dma.done %s222, 32
        $region36: #{tpu_custom_call.1} parent=31 // pred_fallthru
          _
        %s230 = sand.u32 %s23, 1
        %s231 = scalar_lea.sflag [#allocation6], %s230
        %s232 = sand.u32 %s80, 1
        %s233 = scalar_lea.vmem [#allocation5], %s232
        // Predicated region
        $region37: #{tpu_custom_call.1} parent=31 // pred_check
          %p234 = pneg %p93
        $region38: #{tpu_custom_call.1} parent=31 // pred_check_branch
          %236 = sbr.rel (%p234) target = $region40
        $region39: #{tpu_custom_call.1} parent=31 // pred_region
          %237 = dma.done %s231, 16
        $region40: #{tpu_custom_call.1} parent=31 // pred_fallthru
          _
        // Predicated region
        $region41: #{tpu_custom_call.1} parent=31 // pred_check
          %p238 = pneg %p114
        $region42: #{tpu_custom_call.1} parent=31 // pred_check_branch
          %240 = sbr.rel (%p238) target = $region44
        $region43: #{tpu_custom_call.1} parent=31 // pred_region
          %241 = dma.done [#allocation6], 2048
        $region44: #{tpu_custom_call.1} parent=31 // pred_fallthru
          _
        %s242 = sand.u32 %s54, 1
        %s243 = scalar_lea.sflag [#allocation3], %s242
        %s244 = sand.u32 %s54, 1
        %s245 = smul.addr %s244, 2
        %s246 = scalar_lea.vmem [#allocation2], %s245
        %p247 = pneg %p67
        %p248 = pneg %p64
        %s249 = sand.u32 %s23, 1
        %s250 = scalar_lea.sflag [#allocation6], %s249
        %s251 = sand.u32 %s80, 1
        %s252 = scalar_lea.vmem [#allocation5], %s251
        %p253 = pneg %p93
        %p254 = pneg %p90
        %p255 = pneg %p114
        %p256 = pneg %p111
        %p257 = pneg %p144
        %p258 = pneg %p141
        %s259 = sand.u32 %s131, 1
        %s260 = scalar_lea.sflag [#allocation4], %s259
        %s261 = sand.u32 %s131, 1
        %s262 = smul.addr %s261, 2
        %s263 = scalar_lea.vmem [#allocation8], %s262
        %v264 = vld [vmem:[%s225] sm:$0x3]
        %v265 = vmul.f32 %v264, %v264
        %v266 = vld [vmem:[#allocation7] sm:$0xff]
        %v267 = vld [vmem:[#allocation7 + $0x8] sm:$0xff]
        %v268 = vld [vmem:[#allocation7 + $0x10] sm:$0xff]
        %v269 = vld [vmem:[#allocation7 + $0x18] sm:$0xff]
        %v270 = vld [vmem:[#allocation7 + $0x20] sm:$0xff]
        %v271 = vld [vmem:[#allocation7 + $0x28] sm:$0xff]
        %v272 = vld [vmem:[#allocation7 + $0x30] sm:$0xff]
        %v273 = vld [vmem:[#allocation7 + $0x38] sm:$0xff]
        %v274 = vld [vmem:[#allocation7 + $0x40] sm:$0xff]
        %v275 = vld [vmem:[#allocation7 + $0x48] sm:$0xff]
        %v276 = vld [vmem:[#allocation7 + $0x50] sm:$0xff]
        %v277 = vld [vmem:[#allocation7 + $0x58] sm:$0xff]
        %v278 = vld [vmem:[#allocation7 + $0x60] sm:$0xff]
        %v279 = vld [vmem:[#allocation7 + $0x68] sm:$0xff]
        %v280 = vld [vmem:[#allocation7 + $0x70] sm:$0xff]
        %v281 = vld [vmem:[#allocation7 + $0x78] sm:$0xff]
        %282 = vmatprep.subr.mxu0 0.0
        %v283 = vand.u32 %v266, 4294901760
        %284 = vmatpush1.msra.mxu0 %v283
        %285 = vmatprep.subr.mxu0 0.0
        %v286 = vand.u32 %v267, 4294901760
        %287 = vmatpush1.msra.mxu0 %v286
        %288 = vmatprep.subr.mxu0 0.0
        %v289 = vand.u32 %v268, 4294901760
        %290 = vmatpush1.msra.mxu0 %v289
        %291 = vmatprep.subr.mxu0 0.0
        %v292 = vand.u32 %v269, 4294901760
        %293 = vmatpush1.msra.mxu0 %v292
        %294 = vmatprep.subr.mxu0 0.0
        %v295 = vand.u32 %v270, 4294901760
        %296 = vmatpush1.msra.mxu0 %v295
        %297 = vmatprep.subr.mxu0 0.0
        %v298 = vand.u32 %v271, 4294901760
        %299 = vmatpush1.msra.mxu0 %v298
        %300 = vmatprep.subr.mxu0 0.0
        %v301 = vand.u32 %v272, 4294901760
        %302 = vmatpush1.msra.mxu0 %v301
        %303 = vmatprep.subr.mxu0 0.0
        %v304 = vand.u32 %v273, 4294901760
        %305 = vmatpush1.msra.mxu0 %v304
        %306 = vmatprep.subr.mxu0 0.0
        %v307 = vand.u32 %v274, 4294901760
        %308 = vmatpush1.msra.mxu0 %v307
        %309 = vmatprep.subr.mxu0 0.0
        %v310 = vand.u32 %v275, 4294901760
        %311 = vmatpush1.msra.mxu0 %v310
        %312 = vmatprep.subr.mxu0 0.0
        %v313 = vand.u32 %v276, 4294901760
        %314 = vmatpush1.msra.mxu0 %v313
        %315 = vmatprep.subr.mxu0 0.0
        %v316 = vand.u32 %v277, 4294901760
        %317 = vmatpush1.msra.mxu0 %v316
        %318 = vmatprep.subr.mxu0 0.0
        %v319 = vand.u32 %v278, 4294901760
        %320 = vmatpush1.msra.mxu0 %v319
        %321 = vmatprep.subr.mxu0 0.0
        %v322 = vand.u32 %v279, 4294901760
        %323 = vmatpush1.msra.mxu0 %v322
        %324 = vmatprep.subr.mxu0 0.0
        %v325 = vand.u32 %v280, 4294901760
        %326 = vmatpush1.msra.mxu0 %v325
        %327 = vmatprep.subr.mxu0 0.0
        %v328 = vand.u32 %v281, 4294901760
        %329 = vmatpush1.msra.mxu0 %v328
        %330 = vmatprep.subr.mxu0 0.0
        %331 = vmatpush1.msra.mxu0 0.0
        %332 = vmatprep.subr.mxu0 0.0
        %333 = vmatpush1.msra.mxu0 0.0
        %334 = vmatprep.subr.mxu0 0.0
        %335 = vmatpush1.msra.mxu0 0.0
        %336 = vmatprep.subr.mxu0 0.0
        %337 = vmatpush1.msra.mxu0 0.0
        %338 = vmatprep.subr.mxu0 0.0
        %339 = vmatpush1.msra.mxu0 0.0
        %340 = vmatprep.subr.mxu0 0.0
        %341 = vmatpush1.msra.mxu0 0.0
        %342 = vmatprep.subr.mxu0 0.0
        %343 = vmatpush1.msra.mxu0 0.0
        %344 = vmatprep.subr.mxu0 0.0
        %345 = vmatpush1.msra.mxu0 0.0
        %346 = vmatprep.subr.mxu0 0.0
        %347 = vmatpush1.msra.mxu0 0.0
        %348 = vmatprep.subr.mxu0 0.0
        %349 = vmatpush1.msra.mxu0 0.0
        %350 = vmatprep.subr.mxu0 0.0
        %351 = vmatpush1.msra.mxu0 0.0
        %352 = vmatprep.subr.mxu0 0.0
        %353 = vmatpush1.msra.mxu0 0.0
        %354 = vmatprep.subr.mxu0 0.0
        %355 = vmatpush1.msra.mxu0 0.0
        %356 = vmatprep.subr.mxu0 0.0
        %357 = vmatpush1.msra.mxu0 0.0
        %358 = vmatprep.subr.mxu0 0.0
        %359 = vmatpush1.msra.mxu0 0.0
        %360 = vmatprep.subr.mxu0 0.0
        %361 = vmatpush1.msra.mxu0 0.0
        %362 = vmatprep.mubr.f32.mxu0 0.0
        %v363 = vand.u32 %v265, 4294901760
        %v364 = vsub.f32 %v265, %v363
        %v365 = vand.u32 %v364, 4294901760
        %v366 = vsub.f32 %v364, %v365
        %v367 = vand.u32 %v366, 4294901760
        %368 = vmatmul.mubr.f32.gmra.mrb[0].mxu0 %v367
        %v369 = vpop.f32.mrb[0].mxu0
        %v370 = vadd.f32 0.0, %v369
        %v371 = vpop.f32.mrb[0].mxu0
        %372 = vdwg.mxu0
        %373 = vmatprep.subr.mxu0 0.0
        %v374 = vand.u32 %v266, 4294901760
        %v375 = vsub.f32 %v266, %v374
        %v376 = vand.u32 %v375, 4294901760
        %v377 = vsub.f32 %v375, %v376
        %v378 = vand.u32 %v377, 4294901760
        %379 = vmatpush1.msra.mxu0 %v378
        %380 = vmatprep.subr.mxu0 0.0
        %v381 = vand.u32 %v267, 4294901760
        %v382 = vsub.f32 %v267, %v381
        %v383 = vand.u32 %v382, 4294901760
        %v384 = vsub.f32 %v382, %v383
        %v385 = vand.u32 %v384, 4294901760
        %386 = vmatpush1.msra.mxu0 %v385
        %387 = vmatprep.subr.mxu0 0.0
        %v388 = vand.u32 %v268, 4294901760
        %v389 = vsub.f32 %v268, %v388
        %v390 = vand.u32 %v389, 4294901760
        %v391 = vsub.f32 %v389, %v390
        %v392 = vand.u32 %v391, 4294901760
        %393 = vmatpush1.msra.mxu0 %v392
        %394 = vmatprep.subr.mxu0 0.0
        %v395 = vand.u32 %v269, 4294901760
        %v396 = vsub.f32 %v269, %v395
        %v397 = vand.u32 %v396, 4294901760
        %v398 = vsub.f32 %v396, %v397
        %v399 = vand.u32 %v398, 4294901760
        %400 = vmatpush1.msra.mxu0 %v399
        %401 = vmatprep.subr.mxu0 0.0
        %v402 = vand.u32 %v270, 4294901760
        %v403 = vsub.f32 %v270, %v402
        %v404 = vand.u32 %v403, 4294901760
        %v405 = vsub.f32 %v403, %v404
        %v406 = vand.u32 %v405, 4294901760
        %407 = vmatpush1.msra.mxu0 %v406
        %408 = vmatprep.subr.mxu0 0.0
        %v409 = vand.u32 %v271, 4294901760
        %v410 = vsub.f32 %v271, %v409
        %v411 = vand.u32 %v410, 4294901760
        %v412 = vsub.f32 %v410, %v411
        %v413 = vand.u32 %v412, 4294901760
        %414 = vmatpush1.msra.mxu0 %v413
        %415 = vmatprep.subr.mxu0 0.0
        %v416 = vand.u32 %v272, 4294901760
        %v417 = vsub.f32 %v272, %v416
        %v418 = vand.u32 %v417, 4294901760
        %v419 = vsub.f32 %v417, %v418
        %v420 = vand.u32 %v419, 4294901760
        %421 = vmatpush1.msra.mxu0 %v420
        %422 = vmatprep.subr.mxu0 0.0
        %v423 = vand.u32 %v273, 4294901760
        %v424 = vsub.f32 %v273, %v423
        %v425 = vand.u32 %v424, 4294901760
        %v426 = vsub.f32 %v424, %v425
        %v427 = vand.u32 %v426, 4294901760
        %428 = vmatpush1.msra.mxu0 %v427
        %429 = vmatprep.subr.mxu0 0.0
        %v430 = vand.u32 %v274, 4294901760
        %v431 = vsub.f32 %v274, %v430
        %v432 = vand.u32 %v431, 4294901760
        %v433 = vsub.f32 %v431, %v432
        %v434 = vand.u32 %v433, 4294901760
        %435 = vmatpush1.msra.mxu0 %v434
        %436 = vmatprep.subr.mxu0 0.0
        %v437 = vand.u32 %v275, 4294901760
        %v438 = vsub.f32 %v275, %v437
        %v439 = vand.u32 %v438, 4294901760
        %v440 = vsub.f32 %v438, %v439
        %v441 = vand.u32 %v440, 4294901760
        %442 = vmatpush1.msra.mxu0 %v441
        %443 = vmatprep.subr.mxu0 0.0
        %v444 = vand.u32 %v276, 4294901760
        %v445 = vsub.f32 %v276, %v444
        %v446 = vand.u32 %v445, 4294901760
        %v447 = vsub.f32 %v445, %v446
        %v448 = vand.u32 %v447, 4294901760
        %449 = vmatpush1.msra.mxu0 %v448
        %450 = vmatprep.subr.mxu0 0.0
        %v451 = vand.u32 %v277, 4294901760
        %v452 = vsub.f32 %v277, %v451
        %v453 = vand.u32 %v452, 4294901760
        %v454 = vsub.f32 %v452, %v453
        %v455 = vand.u32 %v454, 4294901760
        %456 = vmatpush1.msra.mxu0 %v455
        %457 = vmatprep.subr.mxu0 0.0
        %v458 = vand.u32 %v278, 4294901760
        %v459 = vsub.f32 %v278, %v458
        %v460 = vand.u32 %v459, 4294901760
        %v461 = vsub.f32 %v459, %v460
        %v462 = vand.u32 %v461, 4294901760
        %463 = vmatpush1.msra.mxu0 %v462
        %464 = vmatprep.subr.mxu0 0.0
        %v465 = vand.u32 %v279, 4294901760
        %v466 = vsub.f32 %v279, %v465
        %v467 = vand.u32 %v466, 4294901760
        %v468 = vsub.f32 %v466, %v467
        %v469 = vand.u32 %v468, 4294901760
        %470 = vmatpush1.msra.mxu0 %v469
        %471 = vmatprep.subr.mxu0 0.0
        %v472 = vand.u32 %v280, 4294901760
        %v473 = vsub.f32 %v280, %v472
        %v474 = vand.u32 %v473, 4294901760
        %v475 = vsub.f32 %v473, %v474
        %v476 = vand.u32 %v475, 4294901760
        %477 = vmatpush1.msra.mxu0 %v476
        %478 = vmatprep.subr.mxu0 0.0
        %v479 = vand.u32 %v281, 4294901760
        %v480 = vsub.f32 %v281, %v479
        %v481 = vand.u32 %v480, 4294901760
        %v482 = vsub.f32 %v480, %v481
        %v483 = vand.u32 %v482, 4294901760
        %484 = vmatpush1.msra.mxu0 %v483
        %485 = vmatprep.subr.mxu0 0.0
        %486 = vmatpush1.msra.mxu0 0.0
        %487 = vmatprep.subr.mxu0 0.0
        %488 = vmatpush1.msra.mxu0 0.0
        %489 = vmatprep.subr.mxu0 0.0
        %490 = vmatpush1.msra.mxu0 0.0
        %491 = vmatprep.subr.mxu0 0.0
        %492 = vmatpush1.msra.mxu0 0.0
        %493 = vmatprep.subr.mxu0 0.0
        %494 = vmatpush1.msra.mxu0 0.0
        %495 = vmatprep.subr.mxu0 0.0
        %496 = vmatpush1.msra.mxu0 0.0
        %497 = vmatprep.subr.mxu0 0.0
        %498 = vmatpush1.msra.mxu0 0.0
        %499 = vmatprep.subr.mxu0 0.0
        %500 = vmatpush1.msra.mxu0 0.0
        %501 = vmatprep.subr.mxu0 0.0
        %502 = vmatpush1.msra.mxu0 0.0
        %503 = vmatprep.subr.mxu0 0.0
        %504 = vmatpush1.msra.mxu0 0.0
        %505 = vmatprep.subr.mxu0 0.0
        %506 = vmatpush1.msra.mxu0 0.0
        %507 = vmatprep.subr.mxu0 0.0
        %508 = vmatpush1.msra.mxu0 0.0
        %509 = vmatprep.subr.mxu0 0.0
        %510 = vmatpush1.msra.mxu0 0.0
        %511 = vmatprep.subr.mxu0 0.0
        %512 = vmatpush1.msra.mxu0 0.0
        %513 = vmatprep.subr.mxu0 0.0
        %514 = vmatpush1.msra.mxu0 0.0
        %515 = vmatprep.subr.mxu0 0.0
        %516 = vmatpush1.msra.mxu0 0.0
        %517 = vmatprep.mubr.f32.mxu0 0.0
        %v518 = vand.u32 %v265, 4294901760
        %519 = vmatmul.mubr.f32.gmra.mrb[0].mxu0 %v518
        %v520 = vpop.f32.mrb[0].mxu0
        %v521 = vadd.f32 %v370, %v520
        %v522 = vpop.f32.mrb[0].mxu0
        %523 = vdwg.mxu0
        %524 = vmatprep.subr.mxu0 0.0
        %v525 = vand.u32 %v266, 4294901760
        %v526 = vsub.f32 %v266, %v525
        %527 = vmatpush1.msra.mxu0 %v526
        %528 = vmatprep.subr.mxu0 0.0
        %v529 = vand.u32 %v267, 4294901760
        %v530 = vsub.f32 %v267, %v529
        %531 = vmatpush1.msra.mxu0 %v530
        %532 = vmatprep.subr.mxu0 0.0
        %v533 = vand.u32 %v268, 4294901760
        %v534 = vsub.f32 %v268, %v533
        %535 = vmatpush1.msra.mxu0 %v534
        %536 = vmatprep.subr.mxu0 0.0
        %v537 = vand.u32 %v269, 4294901760
        %v538 = vsub.f32 %v269, %v537
        %539 = vmatpush1.msra.mxu0 %v538
        %540 = vmatprep.subr.mxu0 0.0
        %v541 = vand.u32 %v270, 4294901760
        %v542 = vsub.f32 %v270, %v541
        %543 = vmatpush1.msra.mxu0 %v542
        %544 = vmatprep.subr.mxu0 0.0
        %v545 = vand.u32 %v271, 4294901760
        %v546 = vsub.f32 %v271, %v545
        %547 = vmatpush1.msra.mxu0 %v546
        %548 = vmatprep.subr.mxu0 0.0
        %v549 = vand.u32 %v272, 4294901760
        %v550 = vsub.f32 %v272, %v549
        %551 = vmatpush1.msra.mxu0 %v550
        %552 = vmatprep.subr.mxu0 0.0
        %v553 = vand.u32 %v273, 4294901760
        %v554 = vsub.f32 %v273, %v553
        %555 = vmatpush1.msra.mxu0 %v554
        %556 = vmatprep.subr.mxu0 0.0
        %v557 = vand.u32 %v274, 4294901760
        %v558 = vsub.f32 %v274, %v557
        %559 = vmatpush1.msra.mxu0 %v558
        %560 = vmatprep.subr.mxu0 0.0
        %v561 = vand.u32 %v275, 4294901760
        %v562 = vsub.f32 %v275, %v561
        %563 = vmatpush1.msra.mxu0 %v562
        %564 = vmatprep.subr.mxu0 0.0
        %v565 = vand.u32 %v276, 4294901760
        %v566 = vsub.f32 %v276, %v565
        %567 = vmatpush1.msra.mxu0 %v566
        %568 = vmatprep.subr.mxu0 0.0
        %v569 = vand.u32 %v277, 4294901760
        %v570 = vsub.f32 %v277, %v569
        %571 = vmatpush1.msra.mxu0 %v570
        %572 = vmatprep.subr.mxu0 0.0
        %v573 = vand.u32 %v278, 4294901760
        %v574 = vsub.f32 %v278, %v573
        %575 = vmatpush1.msra.mxu0 %v574
        %576 = vmatprep.subr.mxu0 0.0
        %v577 = vand.u32 %v279, 4294901760
        %v578 = vsub.f32 %v279, %v577
        %579 = vmatpush1.msra.mxu0 %v578
        %580 = vmatprep.subr.mxu0 0.0
        %v581 = vand.u32 %v280, 4294901760
        %v582 = vsub.f32 %v280, %v581
        %583 = vmatpush1.msra.mxu0 %v582
        %584 = vmatprep.subr.mxu0 0.0
        %v585 = vand.u32 %v281, 4294901760
        %v586 = vsub.f32 %v281, %v585
        %587 = vmatpush1.msra.mxu0 %v586
        %588 = vmatprep.subr.mxu0 0.0
        %589 = vmatpush1.msra.mxu0 0.0
        %590 = vmatprep.subr.mxu0 0.0
        %591 = vmatpush1.msra.mxu0 0.0
        %592 = vmatprep.subr.mxu0 0.0
        %593 = vmatpush1.msra.mxu0 0.0
        %594 = vmatprep.subr.mxu0 0.0
        %595 = vmatpush1.msra.mxu0 0.0
        %596 = vmatprep.subr.mxu0 0.0
        %597 = vmatpush1.msra.mxu0 0.0
        %598 = vmatprep.subr.mxu0 0.0
        %599 = vmatpush1.msra.mxu0 0.0
        %600 = vmatprep.subr.mxu0 0.0
        %601 = vmatpush1.msra.mxu0 0.0
        %602 = vmatprep.subr.mxu0 0.0
        %603 = vmatpush1.msra.mxu0 0.0
        %604 = vmatprep.subr.mxu0 0.0
        %605 = vmatpush1.msra.mxu0 0.0
        %606 = vmatprep.subr.mxu0 0.0
        %607 = vmatpush1.msra.mxu0 0.0
        %608 = vmatprep.subr.mxu0 0.0
        %609 = vmatpush1.msra.mxu0 0.0
        %610 = vmatprep.subr.mxu0 0.0
        %611 = vmatpush1.msra.mxu0 0.0
        %612 = vmatprep.subr.mxu0 0.0
        %613 = vmatpush1.msra.mxu0 0.0
        %614 = vmatprep.subr.mxu0 0.0
        %615 = vmatpush1.msra.mxu0 0.0
        %616 = vmatprep.subr.mxu0 0.0
        %617 = vmatpush1.msra.mxu0 0.0
        %618 = vmatprep.subr.mxu0 0.0
        %619 = vmatpush1.msra.mxu0 0.0
        %620 = vmatprep.mubr.f32.mxu0 0.0
        %v621 = vand.u32 %v265, 4294901760
        %v622 = vsub.f32 %v265, %v621
        %623 = vmatmul.mubr.f32.gmra.mrb[0].mxu0 %v622
        %v624 = vpop.f32.mrb[0].mxu0
        %v625 = vadd.f32 %v521, %v624
        %v626 = vpop.f32.mrb[0].mxu0
        %627 = vdwg.mxu0
        %628 = vmatprep.subr.mxu0 0.0
        %v629 = vand.u32 %v266, 4294901760
        %630 = vmatpush1.msra.mxu0 %v629
        %631 = vmatprep.subr.mxu0 0.0
        %v632 = vand.u32 %v267, 4294901760
        %633 = vmatpush1.msra.mxu0 %v632
        %634 = vmatprep.subr.mxu0 0.0
        %v635 = vand.u32 %v268, 4294901760
        %636 = vmatpush1.msra.mxu0 %v635
        %637 = vmatprep.subr.mxu0 0.0
        %v638 = vand.u32 %v269, 4294901760
        %639 = vmatpush1.msra.mxu0 %v638
        %640 = vmatprep.subr.mxu0 0.0
        %v641 = vand.u32 %v270, 4294901760
        %642 = vmatpush1.msra.mxu0 %v641
        %643 = vmatprep.subr.mxu0 0.0
        %v644 = vand.u32 %v271, 4294901760
        %645 = vmatpush1.msra.mxu0 %v644
        %646 = vmatprep.subr.mxu0 0.0
        %v647 = vand.u32 %v272, 4294901760
        %648 = vmatpush1.msra.mxu0 %v647
        %649 = vmatprep.subr.mxu0 0.0
        %v650 = vand.u32 %v273, 4294901760
        %651 = vmatpush1.msra.mxu0 %v650
        %652 = vmatprep.subr.mxu0 0.0
        %v653 = vand.u32 %v274, 4294901760
        %654 = vmatpush1.msra.mxu0 %v653
        %655 = vmatprep.subr.mxu0 0.0
        %v656 = vand.u32 %v275, 4294901760
        %657 = vmatpush1.msra.mxu0 %v656
        %658 = vmatprep.subr.mxu0 0.0
        %v659 = vand.u32 %v276, 4294901760
        %660 = vmatpush1.msra.mxu0 %v659
        %661 = vmatprep.subr.mxu0 0.0
        %v662 = vand.u32 %v277, 4294901760
        %663 = vmatpush1.msra.mxu0 %v662
        %664 = vmatprep.subr.mxu0 0.0
        %v665 = vand.u32 %v278, 4294901760
        %666 = vmatpush1.msra.mxu0 %v665
        %667 = vmatprep.subr.mxu0 0.0
        %v668 = vand.u32 %v279, 4294901760
        %669 = vmatpush1.msra.mxu0 %v668
        %670 = vmatprep.subr.mxu0 0.0
        %v671 = vand.u32 %v280, 4294901760
        %672 = vmatpush1.msra.mxu0 %v671
        %673 = vmatprep.subr.mxu0 0.0
        %v674 = vand.u32 %v281, 4294901760
        %675 = vmatpush1.msra.mxu0 %v674
        %676 = vmatprep.subr.mxu0 0.0
        %677 = vmatpush1.msra.mxu0 0.0
        %678 = vmatprep.subr.mxu0 0.0
        %679 = vmatpush1.msra.mxu0 0.0
        %680 = vmatprep.subr.mxu0 0.0
        %681 = vmatpush1.msra.mxu0 0.0
        %682 = vmatprep.subr.mxu0 0.0
        %683 = vmatpush1.msra.mxu0 0.0
        %684 = vmatprep.subr.mxu0 0.0
        %685 = vmatpush1.msra.mxu0 0.0
        %686 = vmatprep.subr.mxu0 0.0
        %687 = vmatpush1.msra.mxu0 0.0
        %688 = vmatprep.subr.mxu0 0.0
        %689 = vmatpush1.msra.mxu0 0.0
        %690 = vmatprep.subr.mxu0 0.0
        %691 = vmatpush1.msra.mxu0 0.0
        %692 = vmatprep.subr.mxu0 0.0
        %693 = vmatpush1.msra.mxu0 0.0
        %694 = vmatprep.subr.mxu0 0.0
        %695 = vmatpush1.msra.mxu0 0.0
        %696 = vmatprep.subr.mxu0 0.0
        %697 = vmatpush1.msra.mxu0 0.0
        %698 = vmatprep.subr.mxu0 0.0
        %699 = vmatpush1.msra.mxu0 0.0
        %700 = vmatprep.subr.mxu0 0.0
        %701 = vmatpush1.msra.mxu0 0.0
        %702 = vmatprep.subr.mxu0 0.0
        %703 = vmatpush1.msra.mxu0 0.0
        %704 = vmatprep.subr.mxu0 0.0
        %705 = vmatpush1.msra.mxu0 0.0
        %706 = vmatprep.subr.mxu0 0.0
        %707 = vmatpush1.msra.mxu0 0.0
        %708 = vmatprep.mubr.f32.mxu0 0.0
        %v709 = vand.u32 %v265, 4294901760
        %v710 = vsub.f32 %v265, %v709
        %v711 = vand.u32 %v710, 4294901760
        %712 = vmatmul.mubr.f32.gmra.mrb[0].mxu0 %v711
        %v713 = vpop.f32.mrb[0].mxu0
        %v714 = vadd.f32 %v625, %v713
        %v715 = vpop.f32.mrb[0].mxu0
        %716 = vdwg.mxu0
        %717 = vmatprep.subr.mxu0 0.0
        %v718 = vand.u32 %v266, 4294901760
        %v719 = vsub.f32 %v266, %v718
        %v720 = vand.u32 %v719, 4294901760
        %721 = vmatpush1.msra.mxu0 %v720
        %722 = vmatprep.subr.mxu0 0.0
        %v723 = vand.u32 %v267, 4294901760
        %v724 = vsub.f32 %v267, %v723
        %v725 = vand.u32 %v724, 4294901760
        %726 = vmatpush1.msra.mxu0 %v725
        %727 = vmatprep.subr.mxu0 0.0
        %v728 = vand.u32 %v268, 4294901760
        %v729 = vsub.f32 %v268, %v728
        %v730 = vand.u32 %v729, 4294901760
        %731 = vmatpush1.msra.mxu0 %v730
        %732 = vmatprep.subr.mxu0 0.0
        %v733 = vand.u32 %v269, 4294901760
        %v734 = vsub.f32 %v269, %v733
        %v735 = vand.u32 %v734, 4294901760
        %736 = vmatpush1.msra.mxu0 %v735
        %737 = vmatprep.subr.mxu0 0.0
        %v738 = vand.u32 %v270, 4294901760
        %v739 = vsub.f32 %v270, %v738
        %v740 = vand.u32 %v739, 4294901760
        %741 = vmatpush1.msra.mxu0 %v740
        %742 = vmatprep.subr.mxu0 0.0
        %v743 = vand.u32 %v271, 4294901760
        %v744 = vsub.f32 %v271, %v743
        %v745 = vand.u32 %v744, 4294901760
        %746 = vmatpush1.msra.mxu0 %v745
        %747 = vmatprep.subr.mxu0 0.0
        %v748 = vand.u32 %v272, 4294901760
        %v749 = vsub.f32 %v272, %v748
        %v750 = vand.u32 %v749, 4294901760
        %751 = vmatpush1.msra.mxu0 %v750
        %752 = vmatprep.subr.mxu0 0.0
        %v753 = vand.u32 %v273, 4294901760
        %v754 = vsub.f32 %v273, %v753
        %v755 = vand.u32 %v754, 4294901760
        %756 = vmatpush1.msra.mxu0 %v755
        %757 = vmatprep.subr.mxu0 0.0
        %v758 = vand.u32 %v274, 4294901760
        %v759 = vsub.f32 %v274, %v758
        %v760 = vand.u32 %v759, 4294901760
        %761 = vmatpush1.msra.mxu0 %v760
        %762 = vmatprep.subr.mxu0 0.0
        %v763 = vand.u32 %v275, 4294901760
        %v764 = vsub.f32 %v275, %v763
        %v765 = vand.u32 %v764, 4294901760
        %766 = vmatpush1.msra.mxu0 %v765
        %767 = vmatprep.subr.mxu0 0.0
        %v768 = vand.u32 %v276, 4294901760
        %v769 = vsub.f32 %v276, %v768
        %v770 = vand.u32 %v769, 4294901760
        %771 = vmatpush1.msra.mxu0 %v770
        %772 = vmatprep.subr.mxu0 0.0
        %v773 = vand.u32 %v277, 4294901760
        %v774 = vsub.f32 %v277, %v773
        %v775 = vand.u32 %v774, 4294901760
        %776 = vmatpush1.msra.mxu0 %v775
        %777 = vmatprep.subr.mxu0 0.0
        %v778 = vand.u32 %v278, 4294901760
        %v779 = vsub.f32 %v278, %v778
        %v780 = vand.u32 %v779, 4294901760
        %781 = vmatpush1.msra.mxu0 %v780
        %782 = vmatprep.subr.mxu0 0.0
        %v783 = vand.u32 %v279, 4294901760
        %v784 = vsub.f32 %v279, %v783
        %v785 = vand.u32 %v784, 4294901760
        %786 = vmatpush1.msra.mxu0 %v785
        %787 = vmatprep.subr.mxu0 0.0
        %v788 = vand.u32 %v280, 4294901760
        %v789 = vsub.f32 %v280, %v788
        %v790 = vand.u32 %v789, 4294901760
        %791 = vmatpush1.msra.mxu0 %v790
        %792 = vmatprep.subr.mxu0 0.0
        %v793 = vand.u32 %v281, 4294901760
        %v794 = vsub.f32 %v281, %v793
        %v795 = vand.u32 %v794, 4294901760
        %796 = vmatpush1.msra.mxu0 %v795
        %797 = vmatprep.subr.mxu0 0.0
        %798 = vmatpush1.msra.mxu0 0.0
        %799 = vmatprep.subr.mxu0 0.0
        %800 = vmatpush1.msra.mxu0 0.0
        %801 = vmatprep.subr.mxu0 0.0
        %802 = vmatpush1.msra.mxu0 0.0
        %803 = vmatprep.subr.mxu0 0.0
        %804 = vmatpush1.msra.mxu0 0.0
        %805 = vmatprep.subr.mxu0 0.0
        %806 = vmatpush1.msra.mxu0 0.0
        %807 = vmatprep.subr.mxu0 0.0
        %808 = vmatpush1.msra.mxu0 0.0
        %809 = vmatprep.subr.mxu0 0.0
        %810 = vmatpush1.msra.mxu0 0.0
        %811 = vmatprep.subr.mxu0 0.0
        %812 = vmatpush1.msra.mxu0 0.0
        %813 = vmatprep.subr.mxu0 0.0
        %814 = vmatpush1.msra.mxu0 0.0
        %815 = vmatprep.subr.mxu0 0.0
        %816 = vmatpush1.msra.mxu0 0.0
        %817 = vmatprep.subr.mxu0 0.0
        %818 = vmatpush1.msra.mxu0 0.0
        %819 = vmatprep.subr.mxu0 0.0
        %820 = vmatpush1.msra.mxu0 0.0
        %821 = vmatprep.subr.mxu0 0.0
        %822 = vmatpush1.msra.mxu0 0.0
        %823 = vmatprep.subr.mxu0 0.0
        %824 = vmatpush1.msra.mxu0 0.0
        %825 = vmatprep.subr.mxu0 0.0
        %826 = vmatpush1.msra.mxu0 0.0
        %827 = vmatprep.subr.mxu0 0.0
        %828 = vmatpush1.msra.mxu0 0.0
        %829 = vmatprep.mubr.f32.mxu0 0.0
        %v830 = vand.u32 %v265, 4294901760
        %831 = vmatmul.mubr.f32.gmra.mrb[0].mxu0 %v830
        %v832 = vpop.f32.mrb[0].mxu0
        %v833 = vadd.f32 %v714, %v832
        %v834 = vpop.f32.mrb[0].mxu0
        %835 = vdwg.mxu0
        %836 = vmatprep.subr.mxu0 0.0
        %v837 = vand.u32 %v266, 4294901760
        %838 = vmatpush1.msra.mxu0 %v837
        %839 = vmatprep.subr.mxu0 0.0
        %v840 = vand.u32 %v267, 4294901760
        %841 = vmatpush1.msra.mxu0 %v840
        %842 = vmatprep.subr.mxu0 0.0
        %v843 = vand.u32 %v268, 4294901760
        %844 = vmatpush1.msra.mxu0 %v843
        %845 = vmatprep.subr.mxu0 0.0
        %v846 = vand.u32 %v269, 4294901760
        %847 = vmatpush1.msra.mxu0 %v846
        %848 = vmatprep.subr.mxu0 0.0
        %v849 = vand.u32 %v270, 4294901760
        %850 = vmatpush1.msra.mxu0 %v849
        %851 = vmatprep.subr.mxu0 0.0
        %v852 = vand.u32 %v271, 4294901760
        %853 = vmatpush1.msra.mxu0 %v852
        %854 = vmatprep.subr.mxu0 0.0
        %v855 = vand.u32 %v272, 4294901760
        %856 = vmatpush1.msra.mxu0 %v855
        %857 = vmatprep.subr.mxu0 0.0
        %v858 = vand.u32 %v273, 4294901760
        %859 = vmatpush1.msra.mxu0 %v858
        %860 = vmatprep.subr.mxu0 0.0
        %v861 = vand.u32 %v274, 4294901760
        %862 = vmatpush1.msra.mxu0 %v861
        %863 = vmatprep.subr.mxu0 0.0
        %v864 = vand.u32 %v275, 4294901760
        %865 = vmatpush1.msra.mxu0 %v864
        %866 = vmatprep.subr.mxu0 0.0
        %v867 = vand.u32 %v276, 4294901760
        %868 = vmatpush1.msra.mxu0 %v867
        %869 = vmatprep.subr.mxu0 0.0
        %v870 = vand.u32 %v277, 4294901760
        %871 = vmatpush1.msra.mxu0 %v870
        %872 = vmatprep.subr.mxu0 0.0
        %v873 = vand.u32 %v278, 4294901760
        %874 = vmatpush1.msra.mxu0 %v873
        %875 = vmatprep.subr.mxu0 0.0
        %v876 = vand.u32 %v279, 4294901760
        %877 = vmatpush1.msra.mxu0 %v876
        %878 = vmatprep.subr.mxu0 0.0
        %v879 = vand.u32 %v280, 4294901760
        %880 = vmatpush1.msra.mxu0 %v879
        %881 = vmatprep.subr.mxu0 0.0
        %v882 = vand.u32 %v281, 4294901760
        %883 = vmatpush1.msra.mxu0 %v882
        %884 = vmatprep.subr.mxu0 0.0
        %885 = vmatpush1.msra.mxu0 0.0
        %886 = vmatprep.subr.mxu0 0.0
        %887 = vmatpush1.msra.mxu0 0.0
        %888 = vmatprep.subr.mxu0 0.0
        %889 = vmatpush1.msra.mxu0 0.0
        %890 = vmatprep.subr.mxu0 0.0
        %891 = vmatpush1.msra.mxu0 0.0
        %892 = vmatprep.subr.mxu0 0.0
        %893 = vmatpush1.msra.mxu0 0.0
        %894 = vmatprep.subr.mxu0 0.0
        %895 = vmatpush1.msra.mxu0 0.0
        %896 = vmatprep.subr.mxu0 0.0
        %897 = vmatpush1.msra.mxu0 0.0
        %898 = vmatprep.subr.mxu0 0.0
        %899 = vmatpush1.msra.mxu0 0.0
        %900 = vmatprep.subr.mxu0 0.0
        %901 = vmatpush1.msra.mxu0 0.0
        %902 = vmatprep.subr.mxu0 0.0
        %903 = vmatpush1.msra.mxu0 0.0
        %904 = vmatprep.subr.mxu0 0.0
        %905 = vmatpush1.msra.mxu0 0.0
        %906 = vmatprep.subr.mxu0 0.0
        %907 = vmatpush1.msra.mxu0 0.0
        %908 = vmatprep.subr.mxu0 0.0
        %909 = vmatpush1.msra.mxu0 0.0
        %910 = vmatprep.subr.mxu0 0.0
        %911 = vmatpush1.msra.mxu0 0.0
        %912 = vmatprep.subr.mxu0 0.0
        %913 = vmatpush1.msra.mxu0 0.0
        %914 = vmatprep.subr.mxu0 0.0
        %915 = vmatpush1.msra.mxu0 0.0
        %916 = vmatprep.mubr.f32.mxu0 0.0
        %v917 = vand.u32 %v265, 4294901760
        %918 = vmatmul.mubr.f32.gmra.mrb[0].mxu0 %v917
        %v919 = vpop.f32.mrb[0].mxu0
        %v920 = vadd.f32 %v833, %v919
        %v921 = vpop.f32.mrb[0].mxu0
        %922 = vdwg.mxu0
        %v923 = vmax.f32 %v920, 1e-24
        %v924 = vrsqrt.pop %v923
        %v925 = vmul.f32 %v924, 5.656854
        %v926 = vld [vmem:[%s233] sm:$0x1]
        %v927 = vmul.f32 %v264, %v925
        %v929 = vlaneseq
        %v930 = vshrl.u32 %v929, 7
        %v931 = vsub.s32 0, %v930
        %v932 = vrot.slane %v926, %v931
        %v934 = vmul.f32 %v927, %v932
        %935 = vst [vmem:[%s263] sm:$0x3] %v934
        %s936 = sand.u32 %s131, 1
        %s937 = scalar_lea.sflag [#allocation4], %s936
        %s938 = sand.u32 %s131, 1
        %s939 = smul.addr %s938, 2
        %s940 = scalar_lea.vmem [#allocation8], %s939
        // Predicated region
        $region45: #{tpu_custom_call.1} parent=31 // pred_check
          %p941 = pneg %p141
        $region46: #{tpu_custom_call.1} parent=31 // pred_check_branch
          %943 = sbr.rel (%p941) target = $region48
        $region47: #{tpu_custom_call.1} parent=31 // pred_region
          %s945 = ssub.s32 32, 32
          %946 = vsyncadd %s937, %s945
          %s947 = sadd.s32 %s30, %s28
          %s948 = smul.addr %s29, 4
          %s949 = sadd.s32 %s947, %s948
          %s950 = smul.addr %s949, 32
          %s951 = scalar_lea.hbm %s3, %s950
          %s953 = sshll.u32 %s940, 4
          %s954 = int_to_ptr.vmem [resolvable:$true] %s953
          %956 = dma.vmem_to_hbm [thread:$0]  %s954, 32, %s951, %s937
        $region48: #{tpu_custom_call.1} parent=31 // pred_fallthru
          _
      $region32: #{tpu_custom_call.1} parent=5 // pred_fallthru
        _
      %p957 = scmp.le.s32.totalorder 2, %s18
      // Predicated region
      $region49: #{tpu_custom_call.1} parent=5 // pred_check
        %p958 = pneg %p957
      $region50: #{tpu_custom_call.1} parent=5 // pred_check_branch
        %960 = sbr.rel (%p958) target = $region52
      $region51: #{tpu_custom_call.1} parent=5 // pred_region
        %s961 = ssub.s32 %s18, 2
        // Predicated region
        $region53: #{tpu_custom_call.1} parent=51 // pred_check
          %p962 = pneg %p147
        $region54: #{tpu_custom_call.1} parent=51 // pred_check_branch
          %964 = sbr.rel (%p962) target = $region56
        $region55: #{tpu_custom_call.1} parent=51 // pred_region
          %s965 = sand.u32 %s132, 1
          %s966 = scalar_lea.sflag [#allocation4], %s965
          %s967 = sand.u32 %s132, 1
          %s968 = smul.addr %s967, 2
          %s969 = scalar_lea.vmem [#allocation8], %s968
          %970 = dma.done %s966, 32
        $region56: #{tpu_custom_call.1} parent=51 // pred_fallthru
          _
      $region52: #{tpu_custom_call.1} parent=5 // pred_fallthru
        _
    $region6: #{tpu_custom_call.1} parent=1 // loop_footer
      %s22 = sadd.s32 1, %s18
    $region7: #{tpu_custom_call.1} parent=1 // loop_footer_branch
      %17 = sbr.rel target = $region3
    $region8: #{tpu_custom_call.1} parent=1 // loop_exit
      _
    %971 = vsyncpa [#allocation3], 1
    %s972 = scalar_lea.sflag [#allocation3], 1
    %973 = vsyncpa %s972, 1
    %974 = vsyncpa [#allocation6], 1
    %s975 = scalar_lea.sflag [#allocation6], 1
    %976 = vsyncpa %s975, 1
    %977 = vsyncpa [#allocation4], 1
    %s978 = scalar_lea.sflag [#allocation4], 1
    %979 = vsyncpa %s978, 1

</llo_original>
